<compile_context>
chip_gen: v5e
topology: v5e:2x2
jax: 0.10.0
libtpu: 0.0.40
codegen_flags: <defaults>
</compile_context>

<pallas_src>
import jax
import jax.numpy as jnp
from jax import lax
from jax.experimental import pallas as pl
from jax.experimental.pallas import tpu as pltpu

_COUT_PAD = 128  # lane-dense output width (4 phases * 11 channels = 44 real)


# ---------------------------------------------------------------------------
# Pallas kernel: fused (patches @ fused_weight) + shift, ReLU, bf16 store
# ---------------------------------------------------------------------------
def _matmul_bn_relu_kernel(p_ref, w_ref, shift_ref, o_ref):
    # p_ref:     (tm, K)    bf16 patch tile (original-resolution 3x3 patches)
    # w_ref:     (K, 128)   bf16 fused 4-phase weight (BN scale folded in)
    # shift_ref: (8, 128)   f32 per-column shift (row 0 meaningful)
    # o_ref:     (tm, 128)  bf16 output tile (lane-dense)
    acc = jnp.dot(p_ref[...], w_ref[...], preferred_element_type=jnp.float32)
    y = jnp.maximum(acc + shift_ref[0:1, :], 0.0)        # f32 epilogue (v5e-safe)
    o_ref[...] = y.astype(o_ref.dtype)                   # single bf16 store cast


def _fused_matmul_bn_relu(patches, w2d, shift_tile, *, tm):
    M, K = patches.shape
    grid = (pl.cdiv(M, tm),)                              # ragged last block OK
    flops = 2 * M * K * _COUT_PAD
    bytes_accessed = (M * K * 2) + (K * _COUT_PAD * 2) \
                     + (8 * _COUT_PAD * 4) + (M * _COUT_PAD * 2)
    return pl.pallas_call(
        _matmul_bn_relu_kernel,
        out_shape=jax.ShapeDtypeStruct((M, _COUT_PAD), jnp.bfloat16),
        grid=grid,
        in_specs=[
            pl.BlockSpec((tm, K), lambda i: (i, 0)),
            pl.BlockSpec((K, _COUT_PAD), lambda i: (0, 0)),
            pl.BlockSpec((8, _COUT_PAD), lambda i: (0, 0)),
        ],
        out_specs=pl.BlockSpec((tm, _COUT_PAD), lambda i: (i, 0)),
        compiler_params=pltpu.CompilerParams(
            dimension_semantics=("parallel",)),
        cost_estimate=pl.CostEstimate(
            flops=flops, bytes_accessed=bytes_accessed, transcendentals=0),
    )(patches, w2d, shift_tile)


def _pick_tm(M, cap=4096):
    # Big tiles amortize the ~0.35us/step pipeline overhead; keep >= 4 grid
    # steps when M allows so a megacore split still gives >= 2 steps per TC.
    if M >= 4 * cap:
        return cap
    tm = -(-M // 4)                    # ceil(M / 4)
    tm = max(8, -(-tm // 8) * 8)       # round up to a multiple of 8
    return min(tm, cap)


# ---------------------------------------------------------------------------
# im2col on the ORIGINAL resolution (3x3, stride 1, pad 1), feature order
# (ci, dh, dw).  Input is already bf16 so this glue moves half the bytes.
# ---------------------------------------------------------------------------
def _im2col3x3(x):
    N, C, H, W = x.shape
    xp = jnp.pad(x, ((0, 0), (0, 0), (1, 1), (1, 1)))
    taps = [xp[:, :, dh:dh + H, dw:dw + W] for dh in range(3) for dw in range(3)]
    p = jnp.stack(taps, axis=0).reshape(3, 3, N, C, H, W)
    p = jnp.transpose(p, (2, 4, 5, 3, 0, 1))              # (N, H, W, C, dh, dw)
    return p.reshape(N * H * W, C * 9)


# ---------------------------------------------------------------------------
# Module-equivalent wrapper
# ---------------------------------------------------------------------------
class Conv2dTPallas:
    def __init__(self, nin=8, nout=11, ks=3, st=2, padding=1,
                 output_padding=1, key=None):
        assert ks == 3 and st == 2 and padding == 1, \
            "polyphase path implements the module defaults (ks=3, st=2, pad=1)"
        self.nin, self.nout, self.ks, self.st, self.pad = nin, nout, ks, st, padding
        del output_padding  # unused by the reference module as well
        if key is None:
            key = jax.random.PRNGKey(0)
        kw_, kb_ = jax.random.split(key)
        fan_in = nin * ks * ks
        bound = 1.0 / jnp.sqrt(fan_in)
        # Conv weight (Cout, Cin, 3, 3), bias (Cout,)  -- kaiming-uniform-ish
        self.weight = jax.random.uniform(
            kw_, (nout, nin, ks, ks), jnp.float32, -bound, bound)
        self.bias = jax.random.uniform(kb_, (nout,), jnp.float32, -bound, bound)
        # BatchNorm2d params at init (inference-mode stats)
        self.gamma = jnp.ones((nout,), jnp.float32)
        self.beta = jnp.zeros((nout,), jnp.float32)
        self.running_mean = jnp.zeros((nout,), jnp.float32)
        self.running_var = jnp.ones((nout,), jnp.float32)
        self.eps = 1e-5

    # -- fold upsample+conv into 4 polyphase 2x2 kernels, fold BN, pack ------
    def _fused_params(self):
        nout, nin = self.nout, self.nin
        bn_scale = self.gamma / jnp.sqrt(self.running_var + self.eps)   # (Cout,)
        shift = (self.bias - self.running_mean) * bn_scale + self.beta  # (Cout,)
        ws = self.weight * bn_scale[:, None, None, None]      # (Cout, Cin, 3, 3)

        # comb[phase][u, tap]: which original 3x3 taps collapse onto each of
        # the 2 original-resolution taps for that output phase.
        comb = jnp.array([[[1., 0., 0.], [0., 1., 1.]],       # even phase
                          [[1., 1., 0.], [0., 0., 1.]]],      # odd phase
                         jnp.float32)                          # (2, 2, 3)

        # Place each phase's 2x2 kernel at offset (s, t) inside a 3x3 grid so
        # all 4 phases share the same 3x3 original-resolution patch.
        wbig = jnp.zeros((2, 2, nout, nin, 3, 3), jnp.float32)
        for s in range(2):
            for t in range(2):
                wp = jnp.einsum('ud,ve,oide->oiuv', comb[s], comb[t], ws)
                wbig = wbig.at[s, t, :, :, s:s + 2, t:t + 2].set(wp)

        K = nin * 9
        # rows ordered (ci, dh, dw) to match _im2col3x3; cols ordered (s, t, co)
        w2d = jnp.transpose(wbig, (3, 4, 5, 0, 1, 2)).reshape(K, 4 * nout)
        w2d_p = jnp.zeros((K, _COUT_PAD), jnp.float32).at[:, :4 * nout].set(w2d)
        w2d_p = w2d_p.astype(jnp.bfloat16)

        shift4 = jnp.tile(shift, 4)                                   # (4*Cout,)
        shift_p = jnp.zeros((_COUT_PAD,), jnp.float32).at[:4 * nout].set(shift4)
        shift_tile = jnp.tile(shift_p[None, :], (8, 1))               # (8, 128)
        return w2d_p, shift_tile

    # -- (N*H*W, 128) bf16 -> (N, Cout, 2H, 2W) f32 --------------------------
    def _uninterleave(self, out2d, N, H, W):
        nout = self.nout
        y = out2d[:, :4 * nout]                       # slice BEFORE transpose, bf16
        y = y.reshape(N, H, W, 2, 2, nout)            # (N, a, b, s, t, co)
        y = jnp.transpose(y, (0, 5, 1, 3, 2, 4))      # (N, co, a, s, b, t)
        y = y.reshape(N, nout, 2 * H, 2 * W)
        return y.astype(jnp.float32)                  # module-facing f32 output

    def __call__(self, x):
        # x: (N, Cin, H, W) float32  ->  (N, Cout, 2H, 2W) float32
        N, _, H, W = x.shape
        w2d_p, shift_tile = self._fused_params()
        patches = _im2col3x3(x.astype(jnp.bfloat16))   # (N*H*W, Cin*9) bf16
        M = patches.shape[0]
        tm = _pick_tm(M)
        out2d = _fused_matmul_bn_relu(patches, w2d_p, shift_tile, tm=tm)
        return self._uninterleave(out2d, N, H, W)


# ---------------------------------------------------------------------------
# References (pure JAX) for sanity checking
# ---------------------------------------------------------------------------
def _reference(mod, x):
    # exact f32 module semantics: upsample -> conv -> BN(inference) -> ReLU
    st = mod.st
    x_up = jnp.repeat(jnp.repeat(x, st, axis=2), st, axis=3)
    bn_scale = mod.gamma / jnp.sqrt(mod.running_var + mod.eps)
    shift = (mod.bias - mod.running_mean) * bn_scale + mod.beta
    w_scaled = mod.weight * bn_scale[:, None, None, None]
    y = lax.conv_general_dilated(
        x_up, w_scaled, window_strides=(1, 1),
        padding=[(mod.pad, mod.pad), (mod.pad, mod.pad)],
        dimension_numbers=("NCHW", "OIHW", "NCHW"),
        precision=lax.Precision.HIGHEST)
    return jnp.maximum(y + shift[None, :, None, None], 0.0)


def _forward_no_pallas(mod, x):
    # same quantization path as the Pallas kernel (bf16 operands, f32 accum,
    # bf16 store) but with jnp.dot -- tight check incl. ragged last block.
    w2d_p, shift_tile = mod._fused_params()
    N, _, H, W = x.shape
    patches = _im2col3x3(x.astype(jnp.bfloat16))
    acc = jnp.dot(patches.astype(jnp.float32), w2d_p.astype(jnp.float32),
                  precision=lax.Precision.HIGHEST)
    y = jnp.maximum(acc + shift_tile[0:1, :], 0.0).astype(jnp.bfloat16)
    return mod._uninterleave(y, N, H, W)


if __name__ == "__main__":
    key = jax.random.PRNGKey(0)
    k_x, k_x2, k_p = jax.random.split(key, 3)

    mod = Conv2dTPallas(nin=8, nout=11, ks=3, st=2, padding=1, key=k_p)
    fwd = jax.jit(mod.__call__)

    # small shapes consistent with the module: N=2, Cin=8, H=W=16
    x = jax.random.normal(k_x, (2, 8, 16, 16), jnp.float32)
    out = jax.block_until_ready(fwd(x))
    assert out.shape == (2, 11, 32, 32), out.shape

    # tight check vs a pure-jnp path using identical bf16 quantization
    ref_q = _forward_no_pallas(mod, x)
    assert jnp.allclose(out, ref_q, atol=2e-2, rtol=2e-2), "mismatch vs quantized ref"

    # loose check vs exact f32 module semantics (validates the polyphase
    # decomposition; bf16 MXU-operand + bf16-store tolerance)
    ref = _reference(mod, x)
    assert jnp.allclose(out, ref, atol=3e-2, rtol=3e-2), "mismatch vs f32 reference"

    # second shape exercising a ragged last grid block (M=240, tm=64)
    x2 = jax.random.normal(k_x2, (1, 8, 15, 16), jnp.float32)
    out2 = jax.block_until_ready(fwd(x2))
    assert out2.shape == (1, 11, 30, 32), out2.shape
    assert jnp.allclose(out2, _forward_no_pallas(mod, x2), atol=2e-2, rtol=2e-2), \
        "ragged-block mismatch vs quantized ref"
    assert jnp.allclose(out2, _reference(mod, x2), atol=3e-2, rtol=3e-2), \
        "ragged-block mismatch vs f32 reference"

    print("KERNEL_OK")
</pallas_src>

<mosaic_0001>
module attributes {stable_mosaic.version = 11 : i64} {
  func.func @_matmul_bn_relu_kernel(%arg0: i32, %arg1: memref<128x72xbf16, #tpu.memory_space<vmem>>, %arg2: memref<72x128xbf16, #tpu.memory_space<vmem>>, %arg3: memref<8x128xf32, #tpu.memory_space<vmem>>, %arg4: memref<128x128xbf16, #tpu.memory_space<vmem>>) attributes {dimension_semantics = [#tpu.dimension_semantics<parallel>], iteration_bounds = array<i64: 4>, scalar_prefetch = 0 : i64, scratch_operands = 0 : i64, tpu.core_type = #tpu.core_type<tc>, window_params = [{transform_indices = @transform_0, window_bounds = array<i64: 128, 72>}, {pipeline_mode = #tpu.pipeline_mode<synchronous>, transform_indices = @transform_1, window_bounds = array<i64: 72, 128>}, {pipeline_mode = #tpu.pipeline_mode<synchronous>, transform_indices = @transform_2, window_bounds = array<i64: 8, 128>}, {transform_indices = @transform_3, window_bounds = array<i64: 128, 128>}]} {
    %c0 = arith.constant 0 : index
    %c0_0 = arith.constant 0 : index
    %0 = vector.load %arg1[%c0, %c0_0] : memref<128x72xbf16, #tpu.memory_space<vmem>>, vector<128x72xbf16>
    %c0_1 = arith.constant 0 : index
    %c0_2 = arith.constant 0 : index
    %1 = vector.load %arg2[%c0_1, %c0_2] : memref<72x128xbf16, #tpu.memory_space<vmem>>, vector<72x128xbf16>
    %cst = arith.constant dense<0.000000e+00> : vector<128x128xf32>
    %2 = tpu.matmul %0, %1, %cst {dimension_numbers = #tpu.dot_dimension_numbers<[1], [0], [0], [1], [0, 0, 1, 1], [], []>} : vector<128x72xbf16>, vector<72x128xbf16>, vector<128x128xf32> -> vector<128x128xf32>
    %c0_3 = arith.constant 0 : index
    %c0_4 = arith.constant 0 : index
    %3 = vector.load %arg3[%c0_3, %c0_4] : memref<8x128xf32, #tpu.memory_space<vmem>>, vector<1x128xf32>
    %4 = vector.broadcast %3 : vector<1x128xf32> to vector<128x128xf32>
    %5 = arith.addf %2, %4 : vector<128x128xf32>
    %cst_5 = arith.constant 0.000000e+00 : f32
    %6 = vector.broadcast %cst_5 : f32 to vector<128x128xf32>
    %7 = arith.maximumf %5, %6 : vector<128x128xf32>
    %8 = arith.truncf %7 : vector<128x128xf32> to vector<128x128xbf16>
    %c0_6 = arith.constant 0 : index
    %c0_7 = arith.constant 0 : index
    %9 = vector.load %arg4[%c0_6, %c0_7] : memref<128x128xbf16, #tpu.memory_space<vmem>>, vector<128x128xbf16>
    tpu.vector_store %arg4[%c0_6, %c0_7], %8 {strides = array<i32>} : memref<128x128xbf16, #tpu.memory_space<vmem>>, vector<128x128xbf16>,
    return
  }
  func.func @transform_0(%arg0: i32) -> (i32, i32) {
    %c0_i32 = arith.constant 0 : i32
    %c0_i32_0 = arith.constant 0 : i32
    return %arg0, %c0_i32 : i32, i32
  }
  func.func @transform_1(%arg0: i32) -> (i32, i32) {
    %c0_i32 = arith.constant 0 : i32
    %c0_i32_0 = arith.constant 0 : i32
    %c0_i32_1 = arith.constant 0 : i32
    return %c0_i32, %c0_i32_0 : i32, i32
  }
  func.func @transform_2(%arg0: i32) -> (i32, i32) {
    %c0_i32 = arith.constant 0 : i32
    %c0_i32_0 = arith.constant 0 : i32
    %c0_i32_1 = arith.constant 0 : i32
    return %c0_i32, %c0_i32_0 : i32, i32
  }
  func.func @transform_3(%arg0: i32) -> (i32, i32) {
    %c0_i32 = arith.constant 0 : i32
    %c0_i32_0 = arith.constant 0 : i32
    return %arg0, %c0_i32 : i32, i32
  }
}

</mosaic_0001>

<llo_original>
// kernel: tile.10
$region0: #{tile.10}
  #allocation0 [shape = 's32[1]{0}', space=sflag, size = 0x4, scoped, tag = 'scoped memory for tile.10']
  %s0 = inlined_call_operand.vmem [shape: f32[11], index: 0, kind: input, shape index: {}]
  %s1 = inlined_call_operand.vmem [shape: f32[4,11], index: 1, kind: output, shape index: {}]
  // Predicated region
  $region2: #{tile.10} parent=0 // pred_check
    _
  $region3: #{tile.10} parent=0 // pred_check_branch
    %3 = sbr.rel (0) target = $region5
  $region4: #{tile.10} parent=0 // pred_region
    _
  $region5: #{tile.10} parent=0 // pred_fallthru
    _
  %v4 = vld [vmem:[%s0] ss:$0 sm:$0xff]
  %5 = vst [vmem:[%s1] sm:$0xf] %v4

// kernel: a_call__.1
$region0: #{a_call__.1}
  #allocation0 [shape = 'u32[]', space=smem, size = 0x4, offset = 0x4, fixed_abs, tag = 'smem constant byte address 0x4 - core index']
  #allocation1 [shape = 'u32[72,128]{1,0:T(1,128)}', space=vmem, size = 0x9000, scoped, tag = 'internal scratch']
  %s0 = inlined_call_operand.vmem [shape: bf16[512,72], index: 0, kind: input, shape index: {}]
  %s1 = inlined_call_operand.vmem [shape: bf16[72,128], index: 1, kind: input, shape index: {}]
  %s2 = inlined_call_operand.vmem [shape: f32[8,128], index: 2, kind: input, shape index: {}]
  %s3 = inlined_call_operand.vmem [shape: bf16[512,128], index: 3, kind: output, shape index: {}]
  %s4 = sld [smem:[#allocation0]]
  $region45: #{a_call__.1} parent=0
    _
  %s6 = ssub.s32 1, %s4
  %s7 = scalar_select 0, %s6, %s4
  loop: start=0, step=1, limit=6
  $region2: #{a_call__.1} parent=0 // loop_pre_header
    _
  $region3: #{a_call__.1} parent=0 // loop_header
    %s9 = sphi 0, %s13
    %p10 = scmp.ge.s32.totalorder %s9, 6
    %s19 = sphi 0, %s21
    %s22 = sphi 0, %s19
    %s23 = sphi 0, %s22
    %s39 = sphi 0, %s23
    %s43 = sphi 0, %s43
    %s45 = sphi 0, %s43
    %s46 = sphi 0, %s45
    %s60 = sphi 0, %s46
    %s64 = sphi 0, %s64
    %s66 = sphi 0, %s64
    %s67 = sphi 0, %s66
    %s81 = sphi 0, %s67
    %s87 = sphi 0, %s89
    %s90 = sphi 0, %s87
    %s91 = sphi 0, %s90
    %s107 = sphi 0, %s91
  $region4: #{a_call__.1} parent=0 // loop_header_branch
    %12 = sbr.rel (%p10) target = $region8
  $region5: #{a_call__.1} parent=0 // loop_body
    %s14 = ssub.s32 %s9, 1
    %s15 = ssub.s32 %s9, 2
    %s16 = sadd.s32 %s9, 1
    %s17 = ssub.s32 %s9, %s16
    %p18 = scmp.eq.s32.totalorder %s17, 0
    %s20 = sadd.s32 %s19, 1
    %s21 = scalar_select %p18, %s19, %s20
    %p24 = pneg %p18
    %p25 = scmp.eq.s32.totalorder %s9, 3
    %p26 = por %p24, %p25
    %p27 = scmp.ne.s32.totalorder %s19, %s22
    %p28 = scmp.eq.s32.totalorder %s9, 0
    %p29 = por %p27, %p28
    %p30 = scmp.ne.s32.totalorder %s19, %s22
    %p31 = scmp.eq.s32.totalorder %s14, 3
    %p32 = por %p30, %p31
    %p33 = scmp.ne.s32.totalorder %s22, %s23
    %p34 = scmp.eq.s32.totalorder %s14, 0
    %p35 = por %p33, %p34
    %p36 = scmp.ne.s32.totalorder %s22, %s23
    %p37 = scmp.eq.s32.totalorder %s15, 3
    %p38 = por %p36, %p37
    %p40 = scmp.ne.s32.totalorder %s23, %s39
    %p41 = scmp.eq.s32.totalorder %s15, 0
    %p42 = por %p40, %p41
    %s44 = sadd.s32 %s43, 1
    %p47 = scmp.eq.s32.totalorder %s9, 3
    %p48 = scmp.ne.s32.totalorder %s43, %s45
    %p49 = scmp.eq.s32.totalorder %s9, 0
    %p50 = por %p48, %p49
    %p51 = scmp.ne.s32.totalorder %s43, %s45
    %p52 = scmp.eq.s32.totalorder %s14, 3
    %p53 = por %p51, %p52
    %p54 = scmp.ne.s32.totalorder %s45, %s46
    %p55 = scmp.eq.s32.totalorder %s14, 0
    %p56 = por %p54, %p55
    %p57 = scmp.ne.s32.totalorder %s45, %s46
    %p58 = scmp.eq.s32.totalorder %s15, 3
    %p59 = por %p57, %p58
    %p61 = scmp.ne.s32.totalorder %s46, %s60
    %p62 = scmp.eq.s32.totalorder %s15, 0
    %p63 = por %p61, %p62
    %s65 = sadd.s32 %s64, 1
    %p68 = scmp.eq.s32.totalorder %s9, 3
    %p69 = scmp.ne.s32.totalorder %s64, %s66
    %p70 = scmp.eq.s32.totalorder %s9, 0
    %p71 = por %p69, %p70
    %p72 = scmp.ne.s32.totalorder %s64, %s66
    %p73 = scmp.eq.s32.totalorder %s14, 3
    %p74 = por %p72, %p73
    %p75 = scmp.ne.s32.totalorder %s66, %s67
    %p76 = scmp.eq.s32.totalorder %s14, 0
    %p77 = por %p75, %p76
    %p78 = scmp.ne.s32.totalorder %s66, %s67
    %p79 = scmp.eq.s32.totalorder %s15, 3
    %p80 = por %p78, %p79
    %p82 = scmp.ne.s32.totalorder %s67, %s81
    %p83 = scmp.eq.s32.totalorder %s15, 0
    %p84 = por %p82, %p83
    %s85 = ssub.s32 %s9, %s16
    %p86 = scmp.eq.s32.totalorder %s85, 0
    %s88 = sadd.s32 %s87, 1
    %s89 = scalar_select %p86, %s87, %s88
    %p92 = pneg %p86
    %p93 = scmp.eq.s32.totalorder %s9, 3
    %p94 = por %p92, %p93
    %p95 = scmp.ne.s32.totalorder %s87, %s90
    %p96 = scmp.eq.s32.totalorder %s9, 0
    %p97 = por %p95, %p96
    %p98 = scmp.ne.s32.totalorder %s87, %s90
    %p99 = scmp.eq.s32.totalorder %s14, 3
    %p100 = por %p98, %p99
    %p101 = scmp.ne.s32.totalorder %s90, %s91
    %p102 = scmp.eq.s32.totalorder %s14, 0
    %p103 = por %p101, %p102
    %p104 = scmp.ne.s32.totalorder %s90, %s91
    %p105 = scmp.eq.s32.totalorder %s15, 3
    %p106 = por %p104, %p105
    %p108 = scmp.ne.s32.totalorder %s91, %s107
    %p109 = scmp.eq.s32.totalorder %s15, 0
    %p110 = por %p108, %p109
    %p111 = scmp.le.s32.totalorder 1, %s9
    %p112 = scmp.lt.s32.totalorder %s9, 5
    %p113 = pnand %p111, %p112
    %p114 = pneg %p113
    // Predicated region
    $region9: #{a_call__.1} parent=5 // pred_check
      _
    $region10: #{a_call__.1} parent=5 // pred_check_branch
      %116 = sbr.rel (%p113) target = $region12
    $region11: #{a_call__.1} parent=5 // pred_region
      %s117 = ssub.s32 %s9, 1
      // Predicated region
      $region13: #{a_call__.1} parent=11 // pred_check
        %p118 = pneg %p56
      $region14: #{a_call__.1} parent=11 // pred_check_branch
        %120 = sbr.rel (%p118) target = $region16
      $region15: #{a_call__.1} parent=11 // pred_region
        _
      $region16: #{a_call__.1} parent=11 // pred_fallthru
        _
      // Predicated region
      $region17: #{a_call__.1} parent=11 // pred_check
        %p121 = pneg %p77
      $region18: #{a_call__.1} parent=11 // pred_check_branch
        %123 = sbr.rel (%p121) target = $region20
      $region19: #{a_call__.1} parent=11 // pred_region
        _
      $region20: #{a_call__.1} parent=11 // pred_fallthru
        _
    $region12: #{a_call__.1} parent=5 // pred_fallthru
      _
    %p124 = scmp.lt.s32.totalorder %s9, 4
    // Predicated region
    $region21: #{a_call__.1} parent=5 // pred_check
      %p125 = pneg %p124
    $region22: #{a_call__.1} parent=5 // pred_check_branch
      %127 = sbr.rel (%p125) target = $region24
    $region23: #{a_call__.1} parent=5 // pred_region
      // Predicated region
      $region25: #{a_call__.1} parent=23 // pred_check
        %p128 = pneg %p29
      $region26: #{a_call__.1} parent=23 // pred_check_branch
        %130 = sbr.rel (%p128) target = $region28
      $region27: #{a_call__.1} parent=23 // pred_region
        %s131 = smul.u32 16, %s9
        %p132 = scmp.lt.s32.totalorder %s131, 63
        %s133 = scalar_select %p132, %s131, 63
        %s134 = smul.addr %s133, 4
        %s135 = scalar_lea.vmem %s0, %s134
        %s136 = smul.u32 16, %s9
      $region28: #{a_call__.1} parent=23 // pred_fallthru
        _
    $region24: #{a_call__.1} parent=5 // pred_fallthru
      _
    %p137 = scmp.le.s32.totalorder 1, %s9
    %p138 = scmp.lt.s32.totalorder %s9, 5
    %p139 = pnand %p137, %p138
    %p140 = pneg %p139
    // Predicated region
    $region29: #{a_call__.1} parent=5 // pred_check
      _
    $region30: #{a_call__.1} parent=5 // pred_check_branch
      %142 = sbr.rel (%p139) target = $region32
    $region31: #{a_call__.1} parent=5 // pred_region
      %s143 = ssub.s32 %s9, 1
      %s144 = smul.u32 16, %s14
      %p145 = scmp.lt.s32.totalorder %s144, 63
      %s146 = scalar_select %p145, %s144, 63
      %s147 = smul.addr %s146, 4
      %s148 = scalar_lea.vmem %s0, %s147
      %p149 = pneg %p35
      %p150 = pneg %p32
      %p151 = pneg %p56
      %p152 = pneg %p53
      %p153 = pneg %p77
      %p154 = pneg %p74
      %p155 = pneg %p103
      %p156 = pneg %p100
      %s157 = smul.u32 16, %s14
      %p158 = scmp.lt.s32.totalorder %s157, 63
      %s159 = scalar_select %p158, %s157, 63
      %s160 = smul.addr %s159, 4
      %s161 = scalar_lea.vmem %s3, %s160
      %s162 = smul.u32 16, %s14
      %p163 = scmp.lt.s32.totalorder %s162, 63
      %s164 = scalar_select %p163, %s162, 63
      %s165 = smul.addr %s164, 4
      %s166 = scalar_lea.vmem %s0, %s165
      %s167 = smul.u32 16, %s14
      %s168 = smul.u32 16, %s14
      %p169 = scmp.lt.s32.totalorder %s168, 63
      %s170 = scalar_select %p169, %s168, 63
      %s171 = smul.addr %s170, 4
      %s172 = scalar_lea.vmem %s3, %s171
      %s173 = smul.u32 16, %s14
      %v175 = vld [vmem:[%s166] sm:$0xf]
      %v176 = vld [vmem:[%s166 + $0x4] sm:$0xf]
      %v177 = vld [vmem:[%s166 + $0x8] sm:$0xf]
      %v178 = vld [vmem:[%s166 + $0xc] sm:$0xf]
      %v179 = vld [vmem:[%s166 + $0x10] sm:$0xf]
      %v180 = vld [vmem:[%s166 + $0x14] sm:$0xf]
      %v181 = vld [vmem:[%s166 + $0x18] sm:$0xf]
      %v182 = vld [vmem:[%s166 + $0x1c] sm:$0xf]
      %v183 = vld [vmem:[%s166 + $0x20] sm:$0xf]
      %v184 = vld [vmem:[%s166 + $0x24] sm:$0xf]
      %v185 = vld [vmem:[%s166 + $0x28] sm:$0xf]
      %v186 = vld [vmem:[%s166 + $0x2c] sm:$0xf]
      %v187 = vld [vmem:[%s166 + $0x30] sm:$0xf]
      %v188 = vld [vmem:[%s166 + $0x34] sm:$0xf]
      %v189 = vld [vmem:[%s166 + $0x38] sm:$0xf]
      %v190 = vld [vmem:[%s166 + $0x3c] sm:$0xf]
      %v191 = vld [vmem:[%s1] sm:$0xf]
      %v192 = vld [vmem:[%s1 + $0x4] sm:$0xf]
      %v193 = vld [vmem:[%s1 + $0x8] sm:$0xf]
      %v194 = vld [vmem:[%s1 + $0xc] sm:$0xf]
      %v195 = vld [vmem:[%s1 + $0x10] sm:$0xf]
      %v196 = vld [vmem:[%s1 + $0x14] sm:$0xf]
      %v197 = vld [vmem:[%s1 + $0x18] sm:$0xf]
      %v198 = vld [vmem:[%s1 + $0x1c] sm:$0xf]
      %v199 = vld [vmem:[%s1 + $0x20] sm:$0xf]
      %v200 = vld [vmem:[%s2] sm:$0x1]
      %v201 = vperm.slane %v200, 0
      %v218 = vunpack.c.l.b16 %v175
      %v219 = vunpack.c.l.b16 %v176
      %v220 = vunpack.c.l.b16 %v177
      %v221 = vunpack.c.l.b16 %v178
      %v222 = vunpack.c.l.b16 %v179
      %v223 = vunpack.c.l.b16 %v180
      %v224 = vunpack.c.l.b16 %v181
      %v225 = vunpack.c.l.b16 %v182
      %v226 = vunpack.c.l.b16 %v183
      %v227 = vunpack.c.l.b16 %v184
      %v228 = vunpack.c.l.b16 %v185
      %v229 = vunpack.c.l.b16 %v186
      %v230 = vunpack.c.l.b16 %v187
      %v231 = vunpack.c.l.b16 %v188
      %v232 = vunpack.c.l.b16 %v189
      %v233 = vunpack.c.l.b16 %v190
      %v234 = vpack.c.b16 %v219, %v218
      %v235 = vpack.c.b16 %v221, %v220
      %v236 = vpack.c.b16 %v223, %v222
      %v237 = vpack.c.b16 %v225, %v224
      %v238 = vpack.c.b16 %v227, %v226
      %v239 = vpack.c.b16 %v229, %v228
      %v240 = vpack.c.b16 %v231, %v230
      %v241 = vpack.c.b16 %v233, %v232
      %v251 = vunpack.c.l.b16 %v191
      %v252 = vunpack.c.l.b16 %v192
      %v253 = vunpack.c.l.b16 %v193
      %v254 = vunpack.c.l.b16 %v194
      %v255 = vunpack.c.l.b16 %v195
      %v256 = vunpack.c.l.b16 %v196
      %v257 = vunpack.c.l.b16 %v197
      %v258 = vunpack.c.l.b16 %v198
      %v259 = vunpack.c.l.b16 %v199
      %v260 = vpack.c.b16 %v252, %v251
      %v261 = vpack.c.b16 %v254, %v253
      %v262 = vpack.c.b16 %v256, %v255
      %v263 = vpack.c.b16 %v258, %v257
      %v264 = vpack.c.b16 %v259, %v259
      %vm269 = vcmask 588800
      %v271 = vsel %vm269, %v234, 0
      %v274 = vsel %vm269, %v235, 0
      %v277 = vsel %vm269, %v236, 0
      %v280 = vsel %vm269, %v237, 0
      %v283 = vsel %vm269, %v238, 0
      %v286 = vsel %vm269, %v239, 0
      %v289 = vsel %vm269, %v240, 0
      %v292 = vsel %vm269, %v241, 0
      %vm294 = vcmask 1043456
      %v296 = vsel %vm294, %v264, 0
      %298 = vmatpush.bf16.msra.mxu0 0
      %299 = vmatpush.bf16.msra.mxu0 0
      %300 = vmatpush.bf16.msra.mxu0 0
      %301 = vmatpush.bf16.msra.mxu0 %v296
      %302 = vmatpush.bf16.msra.mxu0 %v263
      %303 = vmatpush.bf16.msra.mxu0 %v262
      %304 = vmatpush.bf16.msra.mxu0 %v261
      %305 = vmatpush.bf16.msra.mxu0 %v260
      %306 = vmatmul.bf16.gmra.mxu0 %v271
      %v307 = vpop.f32.mrf.mxu0
      %v308 = vadd.f32 %v201, %v307
      %v309 = vpop.f32.mrf.mxu0
      %v310 = vadd.f32 %v201, %v309
      %311 = vmatmul.bf16.gmra.mxu0 %v274
      %v312 = vpop.f32.mrf.mxu0
      %v313 = vadd.f32 %v201, %v312
      %v314 = vpop.f32.mrf.mxu0
      %v315 = vadd.f32 %v201, %v314
      %316 = vmatmul.bf16.gmra.mxu0 %v277
      %v317 = vpop.f32.mrf.mxu0
      %v318 = vadd.f32 %v201, %v317
      %v319 = vpop.f32.mrf.mxu0
      %v320 = vadd.f32 %v201, %v319
      %321 = vmatmul.bf16.gmra.mxu0 %v280
      %v322 = vpop.f32.mrf.mxu0
      %v323 = vadd.f32 %v201, %v322
      %v324 = vpop.f32.mrf.mxu0
      %v325 = vadd.f32 %v201, %v324
      %326 = vmatmul.bf16.gmra.mxu0 %v283
      %v327 = vpop.f32.mrf.mxu0
      %v328 = vadd.f32 %v201, %v327
      %v329 = vpop.f32.mrf.mxu0
      %v330 = vadd.f32 %v201, %v329
      %331 = vmatmul.bf16.gmra.mxu0 %v286
      %v332 = vpop.f32.mrf.mxu0
      %v333 = vadd.f32 %v201, %v332
      %v334 = vpop.f32.mrf.mxu0
      %v335 = vadd.f32 %v201, %v334
      %336 = vmatmul.bf16.gmra.mxu0 %v289
      %v337 = vpop.f32.mrf.mxu0
      %v338 = vadd.f32 %v201, %v337
      %v339 = vpop.f32.mrf.mxu0
      %v340 = vadd.f32 %v201, %v339
      %341 = vmatmul.bf16.gmra.mxu0 %v292
      %v342 = vpop.f32.mrf.mxu0
      %v343 = vadd.f32 %v201, %v342
      %v344 = vpop.f32.mrf.mxu0
      %v345 = vadd.f32 %v201, %v344
      %346 = vdwg.mxu0
      %v347 = vmax.f32 %v308, 0.0
      %v348 = vmax.f32 %v310, 0.0
      %v349 = vmax.f32 %v313, 0.0
      %v350 = vmax.f32 %v315, 0.0
      %v351 = vmax.f32 %v318, 0.0
      %v352 = vmax.f32 %v320, 0.0
      %v353 = vmax.f32 %v323, 0.0
      %v354 = vmax.f32 %v325, 0.0
      %v355 = vmax.f32 %v328, 0.0
      %v356 = vmax.f32 %v330, 0.0
      %v357 = vmax.f32 %v333, 0.0
      %v358 = vmax.f32 %v335, 0.0
      %v359 = vmax.f32 %v338, 0.0
      %v360 = vmax.f32 %v340, 0.0
      %v361 = vmax.f32 %v343, 0.0
      %v362 = vmax.f32 %v345, 0.0
      %v363 = vpack.c.bf16 %v347, %v347
      %v364 = vpack.c.bf16 %v348, %v348
      %v365 = vpack.c.bf16 %v349, %v349
      %v366 = vpack.c.bf16 %v350, %v350
      %v367 = vpack.c.bf16 %v351, %v351
      %v368 = vpack.c.bf16 %v352, %v352
      %v369 = vpack.c.bf16 %v353, %v353
      %v370 = vpack.c.bf16 %v354, %v354
      %v371 = vpack.c.bf16 %v355, %v355
      %v372 = vpack.c.bf16 %v356, %v356
      %v373 = vpack.c.bf16 %v357, %v357
      %v374 = vpack.c.bf16 %v358, %v358
      %v375 = vpack.c.bf16 %v359, %v359
      %v376 = vpack.c.bf16 %v360, %v360
      %v377 = vpack.c.bf16 %v361, %v361
      %v378 = vpack.c.bf16 %v362, %v362
      %379 = vst [vmem:[%s172] sm:$0xf] %v363
      %380 = vst [vmem:[%s172 + $0x4] sm:$0xf] %v364
      %381 = vst [vmem:[%s172 + $0x8] sm:$0xf] %v365
      %382 = vst [vmem:[%s172 + $0xc] sm:$0xf] %v366
      %383 = vst [vmem:[%s172 + $0x10] sm:$0xf] %v367
      %384 = vst [vmem:[%s172 + $0x14] sm:$0xf] %v368
      %385 = vst [vmem:[%s172 + $0x18] sm:$0xf] %v369
      %386 = vst [vmem:[%s172 + $0x1c] sm:$0xf] %v370
      %387 = vst [vmem:[%s172 + $0x20] sm:$0xf] %v371
      %388 = vst [vmem:[%s172 + $0x24] sm:$0xf] %v372
      %389 = vst [vmem:[%s172 + $0x28] sm:$0xf] %v373
      %390 = vst [vmem:[%s172 + $0x2c] sm:$0xf] %v374
      %391 = vst [vmem:[%s172 + $0x30] sm:$0xf] %v375
      %392 = vst [vmem:[%s172 + $0x34] sm:$0xf] %v376
      %393 = vst [vmem:[%s172 + $0x38] sm:$0xf] %v377
      %394 = vst [vmem:[%s172 + $0x3c] sm:$0xf] %v378
      %s395 = smul.u32 16, %s14
      %p396 = scmp.lt.s32.totalorder %s395, 63
      %s397 = scalar_select %p396, %s395, 63
      %s398 = smul.addr %s397, 4
      %s399 = scalar_lea.vmem %s3, %s398
      // Predicated region
      $region33: #{a_call__.1} parent=31 // pred_check
        %p400 = pneg %p100
      $region34: #{a_call__.1} parent=31 // pred_check_branch
        %402 = sbr.rel (%p400) target = $region36
      $region35: #{a_call__.1} parent=31 // pred_region
        %s403 = smul.u32 16, %s14
      $region36: #{a_call__.1} parent=31 // pred_fallthru
        _
    $region32: #{a_call__.1} parent=5 // pred_fallthru
      _
    %p404 = scmp.le.s32.totalorder 2, %s9
    // Predicated region
    $region37: #{a_call__.1} parent=5 // pred_check
      %p405 = pneg %p404
    $region38: #{a_call__.1} parent=5 // pred_check_branch
      %407 = sbr.rel (%p405) target = $region40
    $region39: #{a_call__.1} parent=5 // pred_region
      %s408 = ssub.s32 %s9, 2
      // Predicated region
      $region41: #{a_call__.1} parent=39 // pred_check
        %p409 = pneg %p106
      $region42: #{a_call__.1} parent=39 // pred_check_branch
        %411 = sbr.rel (%p409) target = $region44
      $region43: #{a_call__.1} parent=39 // pred_region
        %s412 = smul.u32 16, %s15
        %p413 = scmp.lt.s32.totalorder %s412, 63
        %s414 = scalar_select %p413, %s412, 63
        %s415 = smul.addr %s414, 4
        %s416 = scalar_lea.vmem %s3, %s415
      $region44: #{a_call__.1} parent=39 // pred_fallthru
        _
    $region40: #{a_call__.1} parent=5 // pred_fallthru
      _
  $region6: #{a_call__.1} parent=0 // loop_footer
    %s13 = sadd.s32 1, %s9
  $region7: #{a_call__.1} parent=0 // loop_footer_branch
    %8 = sbr.rel target = $region3
  $region8: #{a_call__.1} parent=0 // loop_exit
    _

</llo_original>
